<compile_context>
chip_gen: v5e
topology: v5e:2x2
jax: 0.10.0
libtpu: 0.0.40
codegen_flags: <defaults>
</compile_context>

<pallas_src>
import jax
import jax.numpy as jnp
from jax.experimental import pallas as pl
from jax.experimental.pallas import tpu as pltpu


def _bilinear_matrix(out_size: int, in_size: int, scale: float) -> jnp.ndarray:
    """1-D bilinear interpolation matrix matching PyTorch align_corners=False."""
    dst = jnp.arange(out_size, dtype=jnp.float32)
    # PyTorch: src = (dst + 0.5) / scale - 0.5, clamped to >= 0
    src = jnp.maximum((dst + 0.5) / scale - 0.5, 0.0)
    i0 = jnp.clip(jnp.floor(src).astype(jnp.int32), 0, in_size - 1)
    i1 = jnp.minimum(i0 + 1, in_size - 1)
    w1 = src - i0.astype(jnp.float32)
    w0 = 1.0 - w1
    U = (w0[:, None] * jax.nn.one_hot(i0, in_size, dtype=jnp.float32)
         + w1[:, None] * jax.nn.one_hot(i1, in_size, dtype=jnp.float32))
    return U  # (out_size, in_size)


def linseg_kernel(x_ref, w_ref, b_ref, uw_ref, uh_ref, o_ref):
    # x_ref : (Cin, HW)        bf16  one batch element, channels-first tokens
    # w_ref : (C, Cin)         bf16  1x1-conv weight (channels-first matmul form)
    # b_ref : (C, 1)           f32   conv bias
    # uw_ref: (Win, Wout)      bf16  W-axis bilinear factor, transposed (U_w^T)
    # uh_ref: (Hin, Hout, 1)   f32   H-axis bilinear factor, transposed & expanded
    # o_ref : (C, Hout, Wout)  bf16  NCHW logits for this batch element
    n_cls = w_ref.shape[0]
    win, wout = uw_ref.shape
    hin, hout, _ = uh_ref.shape

    # 1x1 conv as a channels-first matmul (K = Cin = 128), f32 accumulation.
    y = jnp.dot(w_ref[...], x_ref[...], preferred_element_type=jnp.float32)
    y = y + b_ref[...]                       # bias broadcast along tokens (lanes)
    y_bf = y.astype(jnp.bfloat16)            # (C, Hin*Win)

    # Separable bilinear x16 upsample.  For each input row i:
    #   z_i[c, w'] = sum_j y[c, i, j] * Uw[w', j]         (small MXU matmul)
    #   out[c, h, w'] += Uh[h, i] * z_i[c, w']            (VPU weighted blend)
    # Only the two (Hout x Hin) 1-D factors are kept resident — no kron(U, U).
    acc = jnp.zeros((n_cls, hout, wout), jnp.float32)
    for i in range(hin):                     # Hin is small (img_dim / patch_dim)
        z_i = jnp.dot(y_bf[:, i * win:(i + 1) * win], uw_ref[...],
                      preferred_element_type=jnp.float32)     # (C, Wout)
        acc = acc + uh_ref[i] * z_i[:, None, :]               # (C, Hout, Wout)

    o_ref[...] = acc.astype(o_ref.dtype)


def linseg_forward(x_cf, w_t, bias, uw_t, uh_t):
    """x_cf: (B, Cin, HW) bf16; w_t: (C, Cin) bf16; bias: (C, 1) f32;
    uw_t: (Win, Wout) bf16; uh_t: (Hin, Hout, 1) f32.
    Returns NCHW logits (B, C, Hout, Wout) in bf16."""
    B, cin, hw = x_cf.shape
    n_cls = w_t.shape[0]
    win, wout = uw_t.shape
    hin, hout, _ = uh_t.shape

    # NOTE: for very large img_dim one could add a second ("parallel") grid
    # axis tiling Hout, but the separable working set here is already tiny.
    return pl.pallas_call(
        linseg_kernel,
        out_shape=jax.ShapeDtypeStruct((B, n_cls, hout, wout), jnp.bfloat16),
        grid_spec=pltpu.PrefetchScalarGridSpec(
            num_scalar_prefetch=0,
            grid=(B,),
            in_specs=[
                pl.BlockSpec((None, cin, hw), lambda b: (b, 0, 0)),   # x, per batch
                pl.BlockSpec((n_cls, cin), lambda b: (0, 0)),         # conv weight
                pl.BlockSpec((n_cls, 1), lambda b: (0, 0)),           # conv bias
                pl.BlockSpec((win, wout), lambda b: (0, 0)),          # U_w^T
                pl.BlockSpec((hin, hout, 1), lambda b: (0, 0, 0)),    # U_h^T
            ],
            out_specs=pl.BlockSpec((None, n_cls, hout, wout),
                                   lambda b: (b, 0, 0, 0)),
        ),
        compiler_params=pltpu.CompilerParams(
            dimension_semantics=("parallel",)),
    )(x_cf, w_t, bias, uw_t, uh_t)


if __name__ == "__main__":
    # Small shapes consistent with the module (img_dim/patch_dim grid, x16 upsample).
    embed_dim = 32
    num_classes = 8
    img_dim = 64
    patch_dim = 16
    scale = 16
    B = 2
    Hin = img_dim // patch_dim          # 4
    N = Hin * Hin                       # 16 tokens
    Hout = Hin * scale                  # 64

    key = jax.random.PRNGKey(0)
    k_feat, k_w, k_b = jax.random.split(key, 3)

    # feats: list of 4 ViT feature maps (B, N, embed_dim) as in the PyTorch forward.
    feats = [
        jax.random.normal(jax.random.fold_in(k_feat, i), (B, N, embed_dim),
                          jnp.float32)
        for i in range(4)
    ]
    # Deterministic synthetic conv_seg params.
    # PyTorch weight is (num_classes, 4*embed_dim, 1, 1); stored here as its
    # channels-last matmul form (4*embed_dim, num_classes) for the reference.
    w = 0.05 * jax.random.normal(k_w, (4 * embed_dim, num_classes), jnp.float32)
    b = 0.05 * jax.random.normal(k_b, (num_classes,), jnp.float32)

    # Channel concat (same channel ordering as torch.cat(dim=1) after permute).
    x = jnp.concatenate(feats, axis=-1)                   # (B, N, 4*embed_dim)

    # 1-D bilinear factor (square image -> same factor for H and W).
    U = _bilinear_matrix(Hout, Hin, float(scale))         # (Hout, Hin) f32

    # Wrapper-side layout plumbing (tiny XLA ops): channels-first input,
    # transposed conv weight, bf16 casts for the MXU operands.
    x_cf = x.transpose(0, 2, 1).astype(jnp.bfloat16)      # (B, Cin, HW)
    w_t = w.T.astype(jnp.bfloat16)                        # (C, Cin)
    bias = b.reshape(num_classes, 1)                      # (C, 1) f32
    uw_t = U.T.astype(jnp.bfloat16)                       # (Win, Wout)
    uh_t = U.T[:, :, None]                                # (Hin, Hout, 1) f32

    out = linseg_forward(x_cf, w_t, bias, uw_t, uh_t)     # (B, C, Hout, Wout) NCHW
    out = jax.block_until_ready(out)

    # Pure-JAX f32 reference (1x1 conv + separable bilinear) for sanity.
    y_ref = jnp.einsum("bnc,co->bno", x, w) + b
    y_ref = y_ref.reshape(B, Hin, Hin, num_classes)
    ref = jnp.einsum("Hh,bhwo,Ww->bHWo", U, y_ref, U).transpose(0, 3, 1, 2)

    assert out.shape == (B, num_classes, Hout, Hout)
    # bf16 weights/activations/output -> loosened tolerance (per review guidance).
    assert jnp.allclose(out.astype(jnp.float32), ref, atol=5e-2, rtol=5e-2)

    print("KERNEL_OK")
</pallas_src>

<mosaic_0001>
module attributes {stable_mosaic.version = 11 : i64} {
  func.func @linseg_kernel(%arg0: i32, %arg1: memref<1x128x16xbf16, #tpu.memory_space<vmem>>, %arg2: memref<8x128xbf16, #tpu.memory_space<vmem>>, %arg3: memref<8x1xf32, #tpu.memory_space<vmem>>, %arg4: memref<4x64xbf16, #tpu.memory_space<vmem>>, %arg5: memref<4x64x1xf32, #tpu.memory_space<vmem>>, %arg6: memref<1x8x64x64xbf16, #tpu.memory_space<vmem>>) attributes {dimension_semantics = [#tpu.dimension_semantics<parallel>], iteration_bounds = array<i64: 2>, scalar_prefetch = 0 : i64, scratch_operands = 0 : i64, tpu.core_type = #tpu.core_type<tc>, window_params = [{transform_indices = @transform_0, window_bounds = array<i64: 1, 128, 16>}, {pipeline_mode = #tpu.pipeline_mode<synchronous>, transform_indices = @transform_1, window_bounds = array<i64: 8, 128>}, {pipeline_mode = #tpu.pipeline_mode<synchronous>, transform_indices = @transform_2, window_bounds = array<i64: 8, 1>}, {pipeline_mode = #tpu.pipeline_mode<synchronous>, transform_indices = @transform_3, window_bounds = array<i64: 4, 64>}, {pipeline_mode = #tpu.pipeline_mode<synchronous>, transform_indices = @transform_4, window_bounds = array<i64: 4, 64, 1>}, {transform_indices = @transform_5, window_bounds = array<i64: 1, 8, 64, 64>}]} {
    %c0 = arith.constant 0 : index
    %c0_0 = arith.constant 0 : index
    %0 = vector.load %arg2[%c0, %c0_0] : memref<8x128xbf16, #tpu.memory_space<vmem>>, vector<8x128xbf16>
    %c0_1 = arith.constant 0 : index
    %c0_2 = arith.constant 0 : index
    %c0_3 = arith.constant 0 : index
    %1 = vector.load %arg1[%c0_1, %c0_2, %c0_3] : memref<1x128x16xbf16, #tpu.memory_space<vmem>>, vector<1x128x16xbf16>
    %2 = vector.shape_cast %1 : vector<1x128x16xbf16> to vector<128x16xbf16>
    %cst = arith.constant dense<0.000000e+00> : vector<8x16xf32>
    %3 = tpu.matmul %0, %2, %cst {dimension_numbers = #tpu.dot_dimension_numbers<[1], [0], [0], [1], [0, 0, 1, 1], [], []>} : vector<8x128xbf16>, vector<128x16xbf16>, vector<8x16xf32> -> vector<8x16xf32>
    %c0_4 = arith.constant 0 : index
    %c0_5 = arith.constant 0 : index
    %4 = vector.load %arg3[%c0_4, %c0_5] : memref<8x1xf32, #tpu.memory_space<vmem>>, vector<8x1xf32>
    %5 = vector.broadcast %4 : vector<8x1xf32> to vector<8x16xf32>
    %6 = arith.addf %3, %5 : vector<8x16xf32>
    %7 = arith.truncf %6 : vector<8x16xf32> to vector<8x16xbf16>
    %cst_6 = arith.constant 0.000000e+00 : f32
    %8 = vector.broadcast %cst_6 : f32 to vector<8x64x64xf32>
    %9 = vector.extract_strided_slice %7 {offsets = [0, 0], sizes = [8, 4], strides = [1, 1]} : vector<8x16xbf16> to vector<8x4xbf16>
    %c0_7 = arith.constant 0 : index
    %c0_8 = arith.constant 0 : index
    %10 = vector.load %arg4[%c0_7, %c0_8] : memref<4x64xbf16, #tpu.memory_space<vmem>>, vector<4x64xbf16>
    %cst_9 = arith.constant dense<0.000000e+00> : vector<8x64xf32>
    %11 = tpu.matmul %9, %10, %cst_9 {dimension_numbers = #tpu.dot_dimension_numbers<[1], [0], [0], [1], [0, 0, 1, 1], [], []>} : vector<8x4xbf16>, vector<4x64xbf16>, vector<8x64xf32> -> vector<8x64xf32>
    %c0_10 = arith.constant 0 : index
    %c0_11 = arith.constant 0 : index
    %c0_12 = arith.constant 0 : index
    %12 = vector.load %arg5[%c0_10, %c0_11, %c0_12] : memref<4x64x1xf32, #tpu.memory_space<vmem>>, vector<1x64x1xf32>
    %13 = vector.shape_cast %12 : vector<1x64x1xf32> to vector<64x1xf32>
    %14 = vector.shape_cast %11 : vector<8x64xf32> to vector<8x1x64xf32>
    %15 = vector.shape_cast %13 : vector<64x1xf32> to vector<1x64x1xf32>
    %16 = vector.broadcast %15 : vector<1x64x1xf32> to vector<8x64x64xf32>
    %17 = vector.broadcast %14 : vector<8x1x64xf32> to vector<8x64x64xf32>
    %18 = arith.mulf %16, %17 : vector<8x64x64xf32>
    %19 = arith.addf %8, %18 : vector<8x64x64xf32>
    %20 = vector.extract_strided_slice %7 {offsets = [0, 4], sizes = [8, 4], strides = [1, 1]} : vector<8x16xbf16> to vector<8x4xbf16>
    %c0_13 = arith.constant 0 : index
    %c0_14 = arith.constant 0 : index
    %21 = vector.load %arg4[%c0_13, %c0_14] : memref<4x64xbf16, #tpu.memory_space<vmem>>, vector<4x64xbf16>
    %cst_15 = arith.constant dense<0.000000e+00> : vector<8x64xf32>
    %22 = tpu.matmul %20, %21, %cst_15 {dimension_numbers = #tpu.dot_dimension_numbers<[1], [0], [0], [1], [0, 0, 1, 1], [], []>} : vector<8x4xbf16>, vector<4x64xbf16>, vector<8x64xf32> -> vector<8x64xf32>
    %c1 = arith.constant 1 : index
    %c0_16 = arith.constant 0 : index
    %c0_17 = arith.constant 0 : index
    %23 = vector.load %arg5[%c1, %c0_16, %c0_17] : memref<4x64x1xf32, #tpu.memory_space<vmem>>, vector<1x64x1xf32>
    %24 = vector.shape_cast %23 : vector<1x64x1xf32> to vector<64x1xf32>
    %25 = vector.shape_cast %22 : vector<8x64xf32> to vector<8x1x64xf32>
    %26 = vector.shape_cast %24 : vector<64x1xf32> to vector<1x64x1xf32>
    %27 = vector.broadcast %26 : vector<1x64x1xf32> to vector<8x64x64xf32>
    %28 = vector.broadcast %25 : vector<8x1x64xf32> to vector<8x64x64xf32>
    %29 = arith.mulf %27, %28 : vector<8x64x64xf32>
    %30 = arith.addf %19, %29 : vector<8x64x64xf32>
    %31 = vector.extract_strided_slice %7 {offsets = [0, 8], sizes = [8, 4], strides = [1, 1]} : vector<8x16xbf16> to vector<8x4xbf16>
    %c0_18 = arith.constant 0 : index
    %c0_19 = arith.constant 0 : index
    %32 = vector.load %arg4[%c0_18, %c0_19] : memref<4x64xbf16, #tpu.memory_space<vmem>>, vector<4x64xbf16>
    %cst_20 = arith.constant dense<0.000000e+00> : vector<8x64xf32>
    %33 = tpu.matmul %31, %32, %cst_20 {dimension_numbers = #tpu.dot_dimension_numbers<[1], [0], [0], [1], [0, 0, 1, 1], [], []>} : vector<8x4xbf16>, vector<4x64xbf16>, vector<8x64xf32> -> vector<8x64xf32>
    %c2 = arith.constant 2 : index
    %c0_21 = arith.constant 0 : index
    %c0_22 = arith.constant 0 : index
    %34 = vector.load %arg5[%c2, %c0_21, %c0_22] : memref<4x64x1xf32, #tpu.memory_space<vmem>>, vector<1x64x1xf32>
    %35 = vector.shape_cast %34 : vector<1x64x1xf32> to vector<64x1xf32>
    %36 = vector.shape_cast %33 : vector<8x64xf32> to vector<8x1x64xf32>
    %37 = vector.shape_cast %35 : vector<64x1xf32> to vector<1x64x1xf32>
    %38 = vector.broadcast %37 : vector<1x64x1xf32> to vector<8x64x64xf32>
    %39 = vector.broadcast %36 : vector<8x1x64xf32> to vector<8x64x64xf32>
    %40 = arith.mulf %38, %39 : vector<8x64x64xf32>
    %41 = arith.addf %30, %40 : vector<8x64x64xf32>
    %42 = vector.extract_strided_slice %7 {offsets = [0, 12], sizes = [8, 4], strides = [1, 1]} : vector<8x16xbf16> to vector<8x4xbf16>
    %c0_23 = arith.constant 0 : index
    %c0_24 = arith.constant 0 : index
    %43 = vector.load %arg4[%c0_23, %c0_24] : memref<4x64xbf16, #tpu.memory_space<vmem>>, vector<4x64xbf16>
    %cst_25 = arith.constant dense<0.000000e+00> : vector<8x64xf32>
    %44 = tpu.matmul %42, %43, %cst_25 {dimension_numbers = #tpu.dot_dimension_numbers<[1], [0], [0], [1], [0, 0, 1, 1], [], []>} : vector<8x4xbf16>, vector<4x64xbf16>, vector<8x64xf32> -> vector<8x64xf32>
    %c3 = arith.constant 3 : index
    %c0_26 = arith.constant 0 : index
    %c0_27 = arith.constant 0 : index
    %45 = vector.load %arg5[%c3, %c0_26, %c0_27] : memref<4x64x1xf32, #tpu.memory_space<vmem>>, vector<1x64x1xf32>
    %46 = vector.shape_cast %45 : vector<1x64x1xf32> to vector<64x1xf32>
    %47 = vector.shape_cast %44 : vector<8x64xf32> to vector<8x1x64xf32>
    %48 = vector.shape_cast %46 : vector<64x1xf32> to vector<1x64x1xf32>
    %49 = vector.broadcast %48 : vector<1x64x1xf32> to vector<8x64x64xf32>
    %50 = vector.broadcast %47 : vector<8x1x64xf32> to vector<8x64x64xf32>
    %51 = arith.mulf %49, %50 : vector<8x64x64xf32>
    %52 = arith.addf %41, %51 : vector<8x64x64xf32>
    %53 = arith.truncf %52 : vector<8x64x64xf32> to vector<8x64x64xbf16>
    %c0_28 = arith.constant 0 : index
    %c0_29 = arith.constant 0 : index
    %c0_30 = arith.constant 0 : index
    %c0_31 = arith.constant 0 : index
    %54 = vector.load %arg6[%c0_28, %c0_29, %c0_30, %c0_31] : memref<1x8x64x64xbf16, #tpu.memory_space<vmem>>, vector<1x8x64x64xbf16>
    %55 = vector.shape_cast %54 : vector<1x8x64x64xbf16> to vector<8x64x64xbf16>
    %56 = vector.shape_cast %53 : vector<8x64x64xbf16> to vector<1x8x64x64xbf16>
    tpu.vector_store %arg6[%c0_28, %c0_29, %c0_30, %c0_31], %56 {strides = array<i32>} : memref<1x8x64x64xbf16, #tpu.memory_space<vmem>>, vector<1x8x64x64xbf16>,
    return
  }
  func.func @transform_0(%arg0: i32) -> (i32, i32, i32) {
    %c0_i32 = arith.constant 0 : i32
    %c0_i32_0 = arith.constant 0 : i32
    %c0_i32_1 = arith.constant 0 : i32
    return %arg0, %c0_i32, %c0_i32_0 : i32, i32, i32
  }
  func.func @transform_1(%arg0: i32) -> (i32, i32) {
    %c0_i32 = arith.constant 0 : i32
    %c0_i32_0 = arith.constant 0 : i32
    %c0_i32_1 = arith.constant 0 : i32
    return %c0_i32, %c0_i32_0 : i32, i32
  }
  func.func @transform_2(%arg0: i32) -> (i32, i32) {
    %c0_i32 = arith.constant 0 : i32
    %c0_i32_0 = arith.constant 0 : i32
    %c0_i32_1 = arith.constant 0 : i32
    return %c0_i32, %c0_i32_0 : i32, i32
  }
  func.func @transform_3(%arg0: i32) -> (i32, i32) {
    %c0_i32 = arith.constant 0 : i32
    %c0_i32_0 = arith.constant 0 : i32
    %c0_i32_1 = arith.constant 0 : i32
    return %c0_i32, %c0_i32_0 : i32, i32
  }
  func.func @transform_4(%arg0: i32) -> (i32, i32, i32) {
    %c0_i32 = arith.constant 0 : i32
    %c0_i32_0 = arith.constant 0 : i32
    %c0_i32_1 = arith.constant 0 : i32
    %c0_i32_2 = arith.constant 0 : i32
    return %c0_i32, %c0_i32_0, %c0_i32_1 : i32, i32, i32
  }
  func.func @transform_5(%arg0: i32) -> (i32, i32, i32, i32) {
    %c0_i32 = arith.constant 0 : i32
    %c0_i32_0 = arith.constant 0 : i32
    %c0_i32_1 = arith.constant 0 : i32
    %c0_i32_2 = arith.constant 0 : i32
    return %arg0, %c0_i32, %c0_i32_0, %c0_i32_1 : i32, i32, i32, i32
  }
}

</mosaic_0001>

<llo_original>
// kernel: tpu_custom_call.1
$region0: #{tpu_custom_call.1}
  #allocation0 [shape = 'u32[]', space=smem, size = 0x4, offset = 0x4, fixed_abs, tag = 'smem constant byte address 0x4 - core index']
  #allocation1 [shape = 'u32[72,128]{1,0:T(1,128)}', space=vmem, size = 0x9000, scoped, tag = 'internal scratch']
  %s0 = inlined_call_operand.vmem [shape: bf16[2,128,16], index: 0, kind: input, shape index: {}]
  %s1 = inlined_call_operand.vmem [shape: bf16[8,128], index: 1, kind: input, shape index: {}]
  %s2 = inlined_call_operand.vmem [shape: f32[8,1], index: 2, kind: input, shape index: {}]
  %s3 = inlined_call_operand.vmem [shape: bf16[4,64], index: 3, kind: input, shape index: {}]
  %s4 = inlined_call_operand.vmem [shape: f32[4,64,1], index: 4, kind: input, shape index: {}]
  %s5 = inlined_call_operand.hbm [shape: bf16[2,8,64,64], index: 5, kind: output, shape index: {}]
  %s6 = sld [smem:[#allocation0]]
  $region53: #{tpu_custom_call.1} parent=0
    _
  %s8 = ssub.s32 1, %s6
  %s9 = scalar_select 0, %s8, %s6
  $region1: #{tpu_custom_call.1} parent=0
    #allocation2 [shape = 'u8[262144]{0}', space=vmem, size = 0x40000, scoped, tag = 'output window, operand 0']
    #allocation3 [shape = 's32[2]{0}', space=sflag, size = 0x8, scoped, tag = 'scoped memory for tpu_custom_call.1']
    %10 = vsyncpa [#allocation3], 0
    %s11 = scalar_lea.sflag [#allocation3], 1
    %12 = vsyncpa %s11, 0
    loop: start=0, step=1, limit=4
    $region2: #{tpu_custom_call.1} parent=1 // loop_pre_header
      _
    $region3: #{tpu_custom_call.1} parent=1 // loop_header
      %s14 = sphi 0, %s18
      %p15 = scmp.ge.s32.totalorder %s14, 4
      %s24 = sphi 0, %s26
      %s27 = sphi 0, %s24
      %s28 = sphi 0, %s27
      %s44 = sphi 0, %s28
      %s48 = sphi 0, %s48
      %s50 = sphi 0, %s48
      %s51 = sphi 0, %s50
      %s65 = sphi 0, %s51
      %s69 = sphi 0, %s69
      %s71 = sphi 0, %s69
      %s72 = sphi 0, %s71
      %s86 = sphi 0, %s72
      %s90 = sphi 0, %s90
      %s92 = sphi 0, %s90
      %s93 = sphi 0, %s92
      %s107 = sphi 0, %s93
      %s111 = sphi 0, %s111
      %s113 = sphi 0, %s111
      %s114 = sphi 0, %s113
      %s128 = sphi 0, %s114
      %s134 = sphi 0, %s136
      %s137 = sphi 0, %s134
      %s138 = sphi 0, %s137
      %s154 = sphi 0, %s138
    $region4: #{tpu_custom_call.1} parent=1 // loop_header_branch
      %17 = sbr.rel (%p15) target = $region8
    $region5: #{tpu_custom_call.1} parent=1 // loop_body
      %s19 = ssub.s32 %s14, 1
      %s20 = ssub.s32 %s14, 2
      %s21 = sadd.s32 %s14, 1
      %s22 = ssub.s32 %s14, %s21
      %p23 = scmp.eq.s32.totalorder %s22, 0
      %s25 = sadd.s32 %s24, 1
      %s26 = scalar_select %p23, %s24, %s25
      %p29 = pneg %p23
      %p30 = scmp.eq.s32.totalorder %s14, 1
      %p31 = por %p29, %p30
      %p32 = scmp.ne.s32.totalorder %s24, %s27
      %p33 = scmp.eq.s32.totalorder %s14, 0
      %p34 = por %p32, %p33
      %p35 = scmp.ne.s32.totalorder %s24, %s27
      %p36 = scmp.eq.s32.totalorder %s19, 1
      %p37 = por %p35, %p36
      %p38 = scmp.ne.s32.totalorder %s27, %s28
      %p39 = scmp.eq.s32.totalorder %s19, 0
      %p40 = por %p38, %p39
      %p41 = scmp.ne.s32.totalorder %s27, %s28
      %p42 = scmp.eq.s32.totalorder %s20, 1
      %p43 = por %p41, %p42
      %p45 = scmp.ne.s32.totalorder %s28, %s44
      %p46 = scmp.eq.s32.totalorder %s20, 0
      %p47 = por %p45, %p46
      %s49 = sadd.s32 %s48, 1
      %p52 = scmp.eq.s32.totalorder %s14, 1
      %p53 = scmp.ne.s32.totalorder %s48, %s50
      %p54 = scmp.eq.s32.totalorder %s14, 0
      %p55 = por %p53, %p54
      %p56 = scmp.ne.s32.totalorder %s48, %s50
      %p57 = scmp.eq.s32.totalorder %s19, 1
      %p58 = por %p56, %p57
      %p59 = scmp.ne.s32.totalorder %s50, %s51
      %p60 = scmp.eq.s32.totalorder %s19, 0
      %p61 = por %p59, %p60
      %p62 = scmp.ne.s32.totalorder %s50, %s51
      %p63 = scmp.eq.s32.totalorder %s20, 1
      %p64 = por %p62, %p63
      %p66 = scmp.ne.s32.totalorder %s51, %s65
      %p67 = scmp.eq.s32.totalorder %s20, 0
      %p68 = por %p66, %p67
      %s70 = sadd.s32 %s69, 1
      %p73 = scmp.eq.s32.totalorder %s14, 1
      %p74 = scmp.ne.s32.totalorder %s69, %s71
      %p75 = scmp.eq.s32.totalorder %s14, 0
      %p76 = por %p74, %p75
      %p77 = scmp.ne.s32.totalorder %s69, %s71
      %p78 = scmp.eq.s32.totalorder %s19, 1
      %p79 = por %p77, %p78
      %p80 = scmp.ne.s32.totalorder %s71, %s72
      %p81 = scmp.eq.s32.totalorder %s19, 0
      %p82 = por %p80, %p81
      %p83 = scmp.ne.s32.totalorder %s71, %s72
      %p84 = scmp.eq.s32.totalorder %s20, 1
      %p85 = por %p83, %p84
      %p87 = scmp.ne.s32.totalorder %s72, %s86
      %p88 = scmp.eq.s32.totalorder %s20, 0
      %p89 = por %p87, %p88
      %s91 = sadd.s32 %s90, 1
      %p94 = scmp.eq.s32.totalorder %s14, 1
      %p95 = scmp.ne.s32.totalorder %s90, %s92
      %p96 = scmp.eq.s32.totalorder %s14, 0
      %p97 = por %p95, %p96
      %p98 = scmp.ne.s32.totalorder %s90, %s92
      %p99 = scmp.eq.s32.totalorder %s19, 1
      %p100 = por %p98, %p99
      %p101 = scmp.ne.s32.totalorder %s92, %s93
      %p102 = scmp.eq.s32.totalorder %s19, 0
      %p103 = por %p101, %p102
      %p104 = scmp.ne.s32.totalorder %s92, %s93
      %p105 = scmp.eq.s32.totalorder %s20, 1
      %p106 = por %p104, %p105
      %p108 = scmp.ne.s32.totalorder %s93, %s107
      %p109 = scmp.eq.s32.totalorder %s20, 0
      %p110 = por %p108, %p109
      %s112 = sadd.s32 %s111, 1
      %p115 = scmp.eq.s32.totalorder %s14, 1
      %p116 = scmp.ne.s32.totalorder %s111, %s113
      %p117 = scmp.eq.s32.totalorder %s14, 0
      %p118 = por %p116, %p117
      %p119 = scmp.ne.s32.totalorder %s111, %s113
      %p120 = scmp.eq.s32.totalorder %s19, 1
      %p121 = por %p119, %p120
      %p122 = scmp.ne.s32.totalorder %s113, %s114
      %p123 = scmp.eq.s32.totalorder %s19, 0
      %p124 = por %p122, %p123
      %p125 = scmp.ne.s32.totalorder %s113, %s114
      %p126 = scmp.eq.s32.totalorder %s20, 1
      %p127 = por %p125, %p126
      %p129 = scmp.ne.s32.totalorder %s114, %s128
      %p130 = scmp.eq.s32.totalorder %s20, 0
      %p131 = por %p129, %p130
      %s132 = ssub.s32 %s14, %s21
      %p133 = scmp.eq.s32.totalorder %s132, 0
      %s135 = sadd.s32 %s134, 1
      %s136 = scalar_select %p133, %s134, %s135
      %p139 = pneg %p133
      %p140 = scmp.eq.s32.totalorder %s14, 1
      %p141 = por %p139, %p140
      %p142 = scmp.ne.s32.totalorder %s134, %s137
      %p143 = scmp.eq.s32.totalorder %s14, 0
      %p144 = por %p142, %p143
      %p145 = scmp.ne.s32.totalorder %s134, %s137
      %p146 = scmp.eq.s32.totalorder %s19, 1
      %p147 = por %p145, %p146
      %p148 = scmp.ne.s32.totalorder %s137, %s138
      %p149 = scmp.eq.s32.totalorder %s19, 0
      %p150 = por %p148, %p149
      %p151 = scmp.ne.s32.totalorder %s137, %s138
      %p152 = scmp.eq.s32.totalorder %s20, 1
      %p153 = por %p151, %p152
      %p155 = scmp.ne.s32.totalorder %s138, %s154
      %p156 = scmp.eq.s32.totalorder %s20, 0
      %p157 = por %p155, %p156
      %p158 = scmp.le.s32.totalorder 1, %s14
      %p159 = scmp.lt.s32.totalorder %s14, 3
      %p160 = pnand %p158, %p159
      %p161 = pneg %p160
      // Predicated region
      $region9: #{tpu_custom_call.1} parent=5 // pred_check
        _
      $region10: #{tpu_custom_call.1} parent=5 // pred_check_branch
        %163 = sbr.rel (%p160) target = $region12
      $region11: #{tpu_custom_call.1} parent=5 // pred_region
        %s164 = ssub.s32 %s14, 1
        // Predicated region
        $region13: #{tpu_custom_call.1} parent=11 // pred_check
          %p165 = pneg %p61
        $region14: #{tpu_custom_call.1} parent=11 // pred_check_branch
          %167 = sbr.rel (%p165) target = $region16
        $region15: #{tpu_custom_call.1} parent=11 // pred_region
          _
        $region16: #{tpu_custom_call.1} parent=11 // pred_fallthru
          _
        // Predicated region
        $region17: #{tpu_custom_call.1} parent=11 // pred_check
          %p168 = pneg %p82
        $region18: #{tpu_custom_call.1} parent=11 // pred_check_branch
          %170 = sbr.rel (%p168) target = $region20
        $region19: #{tpu_custom_call.1} parent=11 // pred_region
          _
        $region20: #{tpu_custom_call.1} parent=11 // pred_fallthru
          _
        // Predicated region
        $region21: #{tpu_custom_call.1} parent=11 // pred_check
          %p171 = pneg %p103
        $region22: #{tpu_custom_call.1} parent=11 // pred_check_branch
          %173 = sbr.rel (%p171) target = $region24
        $region23: #{tpu_custom_call.1} parent=11 // pred_region
          _
        $region24: #{tpu_custom_call.1} parent=11 // pred_fallthru
          _
        // Predicated region
        $region25: #{tpu_custom_call.1} parent=11 // pred_check
          %p174 = pneg %p124
        $region26: #{tpu_custom_call.1} parent=11 // pred_check_branch
          %176 = sbr.rel (%p174) target = $region28
        $region27: #{tpu_custom_call.1} parent=11 // pred_region
          _
        $region28: #{tpu_custom_call.1} parent=11 // pred_fallthru
          _
      $region12: #{tpu_custom_call.1} parent=5 // pred_fallthru
        _
      %p177 = scmp.lt.s32.totalorder %s14, 2
      // Predicated region
      $region29: #{tpu_custom_call.1} parent=5 // pred_check
        %p178 = pneg %p177
      $region30: #{tpu_custom_call.1} parent=5 // pred_check_branch
        %180 = sbr.rel (%p178) target = $region32
      $region31: #{tpu_custom_call.1} parent=5 // pred_region
        // Predicated region
        $region33: #{tpu_custom_call.1} parent=31 // pred_check
          %p181 = pneg %p34
        $region34: #{tpu_custom_call.1} parent=31 // pred_check_branch
          %183 = sbr.rel (%p181) target = $region36
        $region35: #{tpu_custom_call.1} parent=31 // pred_region
          %p184 = scmp.lt.s32.totalorder %s14, 1
          %s185 = scalar_select %p184, %s14, 1
          %s186 = smul.addr %s185, 16
          %s187 = smul.addr %s186, 4
          %s188 = scalar_lea.vmem %s0, %s187
        $region36: #{tpu_custom_call.1} parent=31 // pred_fallthru
          _
      $region32: #{tpu_custom_call.1} parent=5 // pred_fallthru
        _
      %p189 = scmp.le.s32.totalorder 1, %s14
      %p190 = scmp.lt.s32.totalorder %s14, 3
      %p191 = pnand %p189, %p190
      %p192 = pneg %p191
      // Predicated region
      $region37: #{tpu_custom_call.1} parent=5 // pred_check
        _
      $region38: #{tpu_custom_call.1} parent=5 // pred_check_branch
        %194 = sbr.rel (%p191) target = $region40
      $region39: #{tpu_custom_call.1} parent=5 // pred_region
        %s195 = ssub.s32 %s14, 1
        %p196 = scmp.lt.s32.totalorder %s19, 1
        %s197 = scalar_select %p196, %s19, 1
        %s198 = smul.addr %s197, 16
        %s199 = smul.addr %s198, 4
        %s200 = scalar_lea.vmem %s0, %s199
        %p201 = pneg %p40
        %p202 = pneg %p37
        %p203 = pneg %p61
        %p204 = pneg %p58
        %p205 = pneg %p82
        %p206 = pneg %p79
        %p207 = pneg %p103
        %p208 = pneg %p100
        %p209 = pneg %p124
        %p210 = pneg %p121
        %p211 = pneg %p150
        %p212 = pneg %p147
        %s213 = sand.u32 %s137, 1
        %s214 = scalar_lea.sflag [#allocation3], %s213
        %s215 = sand.u32 %s137, 1
        %s216 = smul.addr %s215, 256
        %s217 = scalar_lea.vmem [#allocation2], %s216
        %p218 = scmp.lt.s32.totalorder %s19, 1
        %s219 = scalar_select %p218, %s19, 1
        %s220 = smul.addr %s219, 16
        %s221 = smul.addr %s220, 4
        %s222 = scalar_lea.vmem %s0, %s221
        %v224 = vld [vmem:[%s1] sm:$0xf]
        %v225 = vld [vmem:[%s222] sm:$0xf]
        %v226 = vld [vmem:[%s222 + $0x4] sm:$0xf]
        %v227 = vld [vmem:[%s222 + $0x8] sm:$0xf]
        %v228 = vld [vmem:[%s222 + $0xc] sm:$0xf]
        %v229 = vld [vmem:[%s222 + $0x10] sm:$0xf]
        %v230 = vld [vmem:[%s222 + $0x14] sm:$0xf]
        %v231 = vld [vmem:[%s222 + $0x18] sm:$0xf]
        %v232 = vld [vmem:[%s222 + $0x1c] sm:$0xf]
        %v233 = vld [vmem:[%s222 + $0x20] sm:$0xf]
        %v234 = vld [vmem:[%s222 + $0x24] sm:$0xf]
        %v235 = vld [vmem:[%s222 + $0x28] sm:$0xf]
        %v236 = vld [vmem:[%s222 + $0x2c] sm:$0xf]
        %v237 = vld [vmem:[%s222 + $0x30] sm:$0xf]
        %v238 = vld [vmem:[%s222 + $0x34] sm:$0xf]
        %v239 = vld [vmem:[%s222 + $0x38] sm:$0xf]
        %v240 = vld [vmem:[%s222 + $0x3c] sm:$0xf]
        %v241 = vld [vmem:[%s2] sm:$0xff]
        %243 = vset.pattern.permute.xlu0 0
        %244 = vperm.xlu0 %243, %v241
        %v245 = vpop.permute.xlu0 %244
        %v263 = vunpack.c.l.b16 %v225
        %v264 = vunpack.c.l.b16 %v226
        %v265 = vunpack.c.l.b16 %v227
        %v266 = vunpack.c.l.b16 %v228
        %v267 = vunpack.c.l.b16 %v229
        %v268 = vunpack.c.l.b16 %v230
        %v269 = vunpack.c.l.b16 %v231
        %v270 = vunpack.c.l.b16 %v232
        %v271 = vunpack.c.l.b16 %v233
        %v272 = vunpack.c.l.b16 %v234
        %v273 = vunpack.c.l.b16 %v235
        %v274 = vunpack.c.l.b16 %v236
        %v275 = vunpack.c.l.b16 %v237
        %v276 = vunpack.c.l.b16 %v238
        %v277 = vunpack.c.l.b16 %v239
        %v278 = vunpack.c.l.b16 %v240
        %v279 = vpack.c.b16 %v264, %v263
        %v280 = vpack.c.b16 %v266, %v265
        %v281 = vpack.c.b16 %v268, %v267
        %v282 = vpack.c.b16 %v270, %v269
        %v283 = vpack.c.b16 %v272, %v271
        %v284 = vpack.c.b16 %v274, %v273
        %v285 = vpack.c.b16 %v276, %v275
        %v286 = vpack.c.b16 %v278, %v277
        %295 = vmatpush.bf16.msra.mxu0 %v286
        %296 = vmatpush.bf16.msra.mxu0 %v285
        %297 = vmatpush.bf16.msra.mxu0 %v284
        %298 = vmatpush.bf16.msra.mxu0 %v283
        %299 = vmatpush.bf16.msra.mxu0 %v282
        %300 = vmatpush.bf16.msra.mxu0 %v281
        %301 = vmatpush.bf16.msra.mxu0 %v280
        %302 = vmatpush.bf16.msra.mxu0 %v279
        %303 = vmatmul.bf16.gmra.mxu0 %v224
        %v304 = vpop.f32.mrf.mxu0
        %v305 = vadd.f32 %v245, %v304
        %v306 = vpop.f32.mrf.mxu0
        %307 = vdwg.mxu0
        %v308 = vpack.c.bf16 %v305, %v305
        %v309 = vld [vmem:[%s3] sm:$0x3]
        %vm310 = vcmask 31744
        %v312 = vsel %vm310, %v308, 0
        %vm314 = vcmask 1041408
        %v316 = vsel %vm314, %v309, 0
        %318 = vmatpush.bf16.msra.mxu0 0
        %319 = vmatpush.bf16.msra.mxu0 0
        %320 = vmatpush.bf16.msra.mxu0 0
        %321 = vmatpush.bf16.msra.mxu0 0
        %322 = vmatpush.bf16.msra.mxu0 0
        %323 = vmatpush.bf16.msra.mxu0 0
        %324 = vmatpush.bf16.msra.mxu0 0
        %325 = vmatpush.bf16.msra.mxu0 %v316
        %326 = vmatmul.bf16.gmra.mxu0 %v312
        %v327 = vpop.f32.mrf.mxu0
        %v328 = vadd.f32 0.0, %v327
        %v329 = vpop.f32.mrf.mxu0
        %330 = vdwg.mxu0
        %v331 = vld [vmem:[%s4] sm:$0xff]
        %v332 = vld [vmem:[%s4 + $0x8] sm:$0xff]
        %v333 = vld [vmem:[%s4 + $0x10] sm:$0xff]
        %v334 = vld [vmem:[%s4 + $0x18] sm:$0xff]
        %v335 = vld [vmem:[%s4 + $0x20] sm:$0xff]
        %v336 = vld [vmem:[%s4 + $0x28] sm:$0xff]
        %v337 = vld [vmem:[%s4 + $0x30] sm:$0xff]
        %v338 = vld [vmem:[%s4 + $0x38] sm:$0xff]
        %v340 = vrot.slane %v328, 1
        %v341 = vrot.slane %v328, 2
        %v342 = vrot.slane %v328, 3
        %v343 = vrot.slane %v328, 4
        %v344 = vrot.slane %v328, 5
        %v345 = vrot.slane %v328, 6
        %v346 = vrot.slane %v328, 7
        %348 = vset.pattern.permute.xlu0 0
        %349 = vperm.xlu0 %348, %v331
        %v350 = vpop.permute.xlu0 %349
        %353 = vset.pattern.permute.xlu0 0
        %354 = vperm.xlu0 %353, %v332
        %v355 = vpop.permute.xlu0 %354
        %358 = vset.pattern.permute.xlu0 0
        %359 = vperm.xlu0 %358, %v333
        %v360 = vpop.permute.xlu0 %359
        %363 = vset.pattern.permute.xlu0 0
        %364 = vperm.xlu0 %363, %v334
        %v365 = vpop.permute.xlu0 %364
        %368 = vset.pattern.permute.xlu0 0
        %369 = vperm.xlu0 %368, %v335
        %v370 = vpop.permute.xlu0 %369
        %373 = vset.pattern.permute.xlu0 0
        %374 = vperm.xlu0 %373, %v336
        %v375 = vpop.permute.xlu0 %374
        %378 = vset.pattern.permute.xlu0 0
        %379 = vperm.xlu0 %378, %v337
        %v380 = vpop.permute.xlu0 %379
        %383 = vset.pattern.permute.xlu0 0
        %384 = vperm.xlu0 %383, %v338
        %v385 = vpop.permute.xlu0 %384
        %v387 = vperm.slane %v328, 0
        %v388 = vperm.slane %v340, 0
        %v389 = vperm.slane %v341, 0
        %v390 = vperm.slane %v342, 0
        %v391 = vperm.slane %v343, 0
        %v392 = vperm.slane %v344, 0
        %v393 = vperm.slane %v345, 0
        %v394 = vperm.slane %v346, 0
        %v403 = vmul.f32 %v350, %v387
        %v404 = vmul.f32 %v355, %v387
        %v405 = vmul.f32 %v360, %v387
        %v406 = vmul.f32 %v365, %v387
        %v407 = vmul.f32 %v370, %v387
        %v408 = vmul.f32 %v375, %v387
        %v409 = vmul.f32 %v380, %v387
        %v410 = vmul.f32 %v385, %v387
        %v411 = vmul.f32 %v350, %v388
        %v412 = vmul.f32 %v355, %v388
        %v413 = vmul.f32 %v360, %v388
        %v414 = vmul.f32 %v365, %v388
        %v415 = vmul.f32 %v370, %v388
        %v416 = vmul.f32 %v375, %v388
        %v417 = vmul.f32 %v380, %v388
        %v418 = vmul.f32 %v385, %v388
        %v419 = vmul.f32 %v350, %v389
        %v420 = vmul.f32 %v355, %v389
        %v421 = vmul.f32 %v360, %v389
        %v422 = vmul.f32 %v365, %v389
        %v423 = vmul.f32 %v370, %v389
        %v424 = vmul.f32 %v375, %v389
        %v425 = vmul.f32 %v380, %v389
        %v426 = vmul.f32 %v385, %v389
        %v427 = vmul.f32 %v350, %v390
        %v428 = vmul.f32 %v355, %v390
        %v429 = vmul.f32 %v360, %v390
        %v430 = vmul.f32 %v365, %v390
        %v431 = vmul.f32 %v370, %v390
        %v432 = vmul.f32 %v375, %v390
        %v433 = vmul.f32 %v380, %v390
        %v434 = vmul.f32 %v385, %v390
        %v435 = vmul.f32 %v350, %v391
        %v436 = vmul.f32 %v355, %v391
        %v437 = vmul.f32 %v360, %v391
        %v438 = vmul.f32 %v365, %v391
        %v439 = vmul.f32 %v370, %v391
        %v440 = vmul.f32 %v375, %v391
        %v441 = vmul.f32 %v380, %v391
        %v442 = vmul.f32 %v385, %v391
        %v443 = vmul.f32 %v350, %v392
        %v444 = vmul.f32 %v355, %v392
        %v445 = vmul.f32 %v360, %v392
        %v446 = vmul.f32 %v365, %v392
        %v447 = vmul.f32 %v370, %v392
        %v448 = vmul.f32 %v375, %v392
        %v449 = vmul.f32 %v380, %v392
        %v450 = vmul.f32 %v385, %v392
        %v451 = vmul.f32 %v350, %v393
        %v452 = vmul.f32 %v355, %v393
        %v453 = vmul.f32 %v360, %v393
        %v454 = vmul.f32 %v365, %v393
        %v455 = vmul.f32 %v370, %v393
        %v456 = vmul.f32 %v375, %v393
        %v457 = vmul.f32 %v380, %v393
        %v458 = vmul.f32 %v385, %v393
        %v459 = vmul.f32 %v350, %v394
        %v460 = vmul.f32 %v355, %v394
        %v461 = vmul.f32 %v360, %v394
        %v462 = vmul.f32 %v365, %v394
        %v463 = vmul.f32 %v370, %v394
        %v464 = vmul.f32 %v375, %v394
        %v465 = vmul.f32 %v380, %v394
        %v466 = vmul.f32 %v385, %v394
        %v467 = vadd.f32 %v403, 0.0
        %v468 = vadd.f32 %v404, 0.0
        %v469 = vadd.f32 %v405, 0.0
        %v470 = vadd.f32 %v406, 0.0
        %v471 = vadd.f32 %v407, 0.0
        %v472 = vadd.f32 %v408, 0.0
        %v473 = vadd.f32 %v409, 0.0
        %v474 = vadd.f32 %v410, 0.0
        %v475 = vadd.f32 %v411, 0.0
        %v476 = vadd.f32 %v412, 0.0
        %v477 = vadd.f32 %v413, 0.0
        %v478 = vadd.f32 %v414, 0.0
        %v479 = vadd.f32 %v415, 0.0
        %v480 = vadd.f32 %v416, 0.0
        %v481 = vadd.f32 %v417, 0.0
        %v482 = vadd.f32 %v418, 0.0
        %v483 = vadd.f32 %v419, 0.0
        %v484 = vadd.f32 %v420, 0.0
        %v485 = vadd.f32 %v421, 0.0
        %v486 = vadd.f32 %v422, 0.0
        %v487 = vadd.f32 %v423, 0.0
        %v488 = vadd.f32 %v424, 0.0
        %v489 = vadd.f32 %v425, 0.0
        %v490 = vadd.f32 %v426, 0.0
        %v491 = vadd.f32 %v427, 0.0
        %v492 = vadd.f32 %v428, 0.0
        %v493 = vadd.f32 %v429, 0.0
        %v494 = vadd.f32 %v430, 0.0
        %v495 = vadd.f32 %v431, 0.0
        %v496 = vadd.f32 %v432, 0.0
        %v497 = vadd.f32 %v433, 0.0
        %v498 = vadd.f32 %v434, 0.0
        %v499 = vadd.f32 %v435, 0.0
        %v500 = vadd.f32 %v436, 0.0
        %v501 = vadd.f32 %v437, 0.0
        %v502 = vadd.f32 %v438, 0.0
        %v503 = vadd.f32 %v439, 0.0
        %v504 = vadd.f32 %v440, 0.0
        %v505 = vadd.f32 %v441, 0.0
        %v506 = vadd.f32 %v442, 0.0
        %v507 = vadd.f32 %v443, 0.0
        %v508 = vadd.f32 %v444, 0.0
        %v509 = vadd.f32 %v445, 0.0
        %v510 = vadd.f32 %v446, 0.0
        %v511 = vadd.f32 %v447, 0.0
        %v512 = vadd.f32 %v448, 0.0
        %v513 = vadd.f32 %v449, 0.0
        %v514 = vadd.f32 %v450, 0.0
        %v515 = vadd.f32 %v451, 0.0
        %v516 = vadd.f32 %v452, 0.0
        %v517 = vadd.f32 %v453, 0.0
        %v518 = vadd.f32 %v454, 0.0
        %v519 = vadd.f32 %v455, 0.0
        %v520 = vadd.f32 %v456, 0.0
        %v521 = vadd.f32 %v457, 0.0
        %v522 = vadd.f32 %v458, 0.0
        %v523 = vadd.f32 %v459, 0.0
        %v524 = vadd.f32 %v460, 0.0
        %v525 = vadd.f32 %v461, 0.0
        %v526 = vadd.f32 %v462, 0.0
        %v527 = vadd.f32 %v463, 0.0
        %v528 = vadd.f32 %v464, 0.0
        %v529 = vadd.f32 %v465, 0.0
        %v530 = vadd.f32 %v466, 0.0
        %v532 = vunpack.c.l.b16 %v308
        %v533 = vpack.c.b16 %v532, %v532
        %534 = vrot.lane.b32.xlu0 %v533, 124
        %v535 = vpop.permute.xlu0 %534
        %v537 = vsel %vm310, %v535, 0
        %539 = vmatpush.bf16.msra.mxu0 0
        %540 = vmatpush.bf16.msra.mxu0 0
        %541 = vmatpush.bf16.msra.mxu0 0
        %542 = vmatpush.bf16.msra.mxu0 0
        %543 = vmatpush.bf16.msra.mxu0 0
        %544 = vmatpush.bf16.msra.mxu0 0
        %545 = vmatpush.bf16.msra.mxu0 0
        %546 = vmatpush.bf16.msra.mxu0 %v316
        %547 = vmatmul.bf16.gmra.mxu0 %v537
        %v548 = vpop.f32.mrf.mxu0
        %v549 = vadd.f32 0.0, %v548
        %v550 = vpop.f32.mrf.mxu0
        %551 = vdwg.mxu0
        %s552 = scalar_lea.vmem %s4, 64
        %v553 = vld [vmem:[%s552] sm:$0xff]
        %v554 = vld [vmem:[%s552 + $0x8] sm:$0xff]
        %v555 = vld [vmem:[%s552 + $0x10] sm:$0xff]
        %v556 = vld [vmem:[%s552 + $0x18] sm:$0xff]
        %v557 = vld [vmem:[%s552 + $0x20] sm:$0xff]
        %v558 = vld [vmem:[%s552 + $0x28] sm:$0xff]
        %v559 = vld [vmem:[%s552 + $0x30] sm:$0xff]
        %v560 = vld [vmem:[%s552 + $0x38] sm:$0xff]
        %v562 = vrot.slane %v549, 1
        %v563 = vrot.slane %v549, 2
        %v564 = vrot.slane %v549, 3
        %v565 = vrot.slane %v549, 4
        %v566 = vrot.slane %v549, 5
        %v567 = vrot.slane %v549, 6
        %v568 = vrot.slane %v549, 7
        %570 = vset.pattern.permute.xlu0 0
        %571 = vperm.xlu0 %570, %v553
        %v572 = vpop.permute.xlu0 %571
        %575 = vset.pattern.permute.xlu0 0
        %576 = vperm.xlu0 %575, %v554
        %v577 = vpop.permute.xlu0 %576
        %580 = vset.pattern.permute.xlu0 0
        %581 = vperm.xlu0 %580, %v555
        %v582 = vpop.permute.xlu0 %581
        %585 = vset.pattern.permute.xlu0 0
        %586 = vperm.xlu0 %585, %v556
        %v587 = vpop.permute.xlu0 %586
        %590 = vset.pattern.permute.xlu0 0
        %591 = vperm.xlu0 %590, %v557
        %v592 = vpop.permute.xlu0 %591
        %595 = vset.pattern.permute.xlu0 0
        %596 = vperm.xlu0 %595, %v558
        %v597 = vpop.permute.xlu0 %596
        %600 = vset.pattern.permute.xlu0 0
        %601 = vperm.xlu0 %600, %v559
        %v602 = vpop.permute.xlu0 %601
        %605 = vset.pattern.permute.xlu0 0
        %606 = vperm.xlu0 %605, %v560
        %v607 = vpop.permute.xlu0 %606
        %v609 = vperm.slane %v549, 0
        %v610 = vperm.slane %v562, 0
        %v611 = vperm.slane %v563, 0
        %v612 = vperm.slane %v564, 0
        %v613 = vperm.slane %v565, 0
        %v614 = vperm.slane %v566, 0
        %v615 = vperm.slane %v567, 0
        %v616 = vperm.slane %v568, 0
        %v625 = vmul.f32 %v572, %v609
        %v626 = vmul.f32 %v577, %v609
        %v627 = vmul.f32 %v582, %v609
        %v628 = vmul.f32 %v587, %v609
        %v629 = vmul.f32 %v592, %v609
        %v630 = vmul.f32 %v597, %v609
        %v631 = vmul.f32 %v602, %v609
        %v632 = vmul.f32 %v607, %v609
        %v633 = vmul.f32 %v572, %v610
        %v634 = vmul.f32 %v577, %v610
        %v635 = vmul.f32 %v582, %v610
        %v636 = vmul.f32 %v587, %v610
        %v637 = vmul.f32 %v592, %v610
        %v638 = vmul.f32 %v597, %v610
        %v639 = vmul.f32 %v602, %v610
        %v640 = vmul.f32 %v607, %v610
        %v641 = vmul.f32 %v572, %v611
        %v642 = vmul.f32 %v577, %v611
        %v643 = vmul.f32 %v582, %v611
        %v644 = vmul.f32 %v587, %v611
        %v645 = vmul.f32 %v592, %v611
        %v646 = vmul.f32 %v597, %v611
        %v647 = vmul.f32 %v602, %v611
        %v648 = vmul.f32 %v607, %v611
        %v649 = vmul.f32 %v572, %v612
        %v650 = vmul.f32 %v577, %v612
        %v651 = vmul.f32 %v582, %v612
        %v652 = vmul.f32 %v587, %v612
        %v653 = vmul.f32 %v592, %v612
        %v654 = vmul.f32 %v597, %v612
        %v655 = vmul.f32 %v602, %v612
        %v656 = vmul.f32 %v607, %v612
        %v657 = vmul.f32 %v572, %v613
        %v658 = vmul.f32 %v577, %v613
        %v659 = vmul.f32 %v582, %v613
        %v660 = vmul.f32 %v587, %v613
        %v661 = vmul.f32 %v592, %v613
        %v662 = vmul.f32 %v597, %v613
        %v663 = vmul.f32 %v602, %v613
        %v664 = vmul.f32 %v607, %v613
        %v665 = vmul.f32 %v572, %v614
        %v666 = vmul.f32 %v577, %v614
        %v667 = vmul.f32 %v582, %v614
        %v668 = vmul.f32 %v587, %v614
        %v669 = vmul.f32 %v592, %v614
        %v670 = vmul.f32 %v597, %v614
        %v671 = vmul.f32 %v602, %v614
        %v672 = vmul.f32 %v607, %v614
        %v673 = vmul.f32 %v572, %v615
        %v674 = vmul.f32 %v577, %v615
        %v675 = vmul.f32 %v582, %v615
        %v676 = vmul.f32 %v587, %v615
        %v677 = vmul.f32 %v592, %v615
        %v678 = vmul.f32 %v597, %v615
        %v679 = vmul.f32 %v602, %v615
        %v680 = vmul.f32 %v607, %v615
        %v681 = vmul.f32 %v572, %v616
        %v682 = vmul.f32 %v577, %v616
        %v683 = vmul.f32 %v582, %v616
        %v684 = vmul.f32 %v587, %v616
        %v685 = vmul.f32 %v592, %v616
        %v686 = vmul.f32 %v597, %v616
        %v687 = vmul.f32 %v602, %v616
        %v688 = vmul.f32 %v607, %v616
        %v689 = vadd.f32 %v467, %v625
        %v690 = vadd.f32 %v468, %v626
        %v691 = vadd.f32 %v469, %v627
        %v692 = vadd.f32 %v470, %v628
        %v693 = vadd.f32 %v471, %v629
        %v694 = vadd.f32 %v472, %v630
        %v695 = vadd.f32 %v473, %v631
        %v696 = vadd.f32 %v474, %v632
        %v697 = vadd.f32 %v475, %v633
        %v698 = vadd.f32 %v476, %v634
        %v699 = vadd.f32 %v477, %v635
        %v700 = vadd.f32 %v478, %v636
        %v701 = vadd.f32 %v479, %v637
        %v702 = vadd.f32 %v480, %v638
        %v703 = vadd.f32 %v481, %v639
        %v704 = vadd.f32 %v482, %v640
        %v705 = vadd.f32 %v483, %v641
        %v706 = vadd.f32 %v484, %v642
        %v707 = vadd.f32 %v485, %v643
        %v708 = vadd.f32 %v486, %v644
        %v709 = vadd.f32 %v487, %v645
        %v710 = vadd.f32 %v488, %v646
        %v711 = vadd.f32 %v489, %v647
        %v712 = vadd.f32 %v490, %v648
        %v713 = vadd.f32 %v491, %v649
        %v714 = vadd.f32 %v492, %v650
        %v715 = vadd.f32 %v493, %v651
        %v716 = vadd.f32 %v494, %v652
        %v717 = vadd.f32 %v495, %v653
        %v718 = vadd.f32 %v496, %v654
        %v719 = vadd.f32 %v497, %v655
        %v720 = vadd.f32 %v498, %v656
        %v721 = vadd.f32 %v499, %v657
        %v722 = vadd.f32 %v500, %v658
        %v723 = vadd.f32 %v501, %v659
        %v724 = vadd.f32 %v502, %v660
        %v725 = vadd.f32 %v503, %v661
        %v726 = vadd.f32 %v504, %v662
        %v727 = vadd.f32 %v505, %v663
        %v728 = vadd.f32 %v506, %v664
        %v729 = vadd.f32 %v507, %v665
        %v730 = vadd.f32 %v508, %v666
        %v731 = vadd.f32 %v509, %v667
        %v732 = vadd.f32 %v510, %v668
        %v733 = vadd.f32 %v511, %v669
        %v734 = vadd.f32 %v512, %v670
        %v735 = vadd.f32 %v513, %v671
        %v736 = vadd.f32 %v514, %v672
        %v737 = vadd.f32 %v515, %v673
        %v738 = vadd.f32 %v516, %v674
        %v739 = vadd.f32 %v517, %v675
        %v740 = vadd.f32 %v518, %v676
        %v741 = vadd.f32 %v519, %v677
        %v742 = vadd.f32 %v520, %v678
        %v743 = vadd.f32 %v521, %v679
        %v744 = vadd.f32 %v522, %v680
        %v745 = vadd.f32 %v523, %v681
        %v746 = vadd.f32 %v524, %v682
        %v747 = vadd.f32 %v525, %v683
        %v748 = vadd.f32 %v526, %v684
        %v749 = vadd.f32 %v527, %v685
        %v750 = vadd.f32 %v528, %v686
        %v751 = vadd.f32 %v529, %v687
        %v752 = vadd.f32 %v530, %v688
        %753 = vrot.lane.b32.xlu0 %v533, 120
        %v754 = vpop.permute.xlu0 %753
        %v756 = vsel %vm310, %v754, 0
        %758 = vmatpush.bf16.msra.mxu0 0
        %759 = vmatpush.bf16.msra.mxu0 0
        %760 = vmatpush.bf16.msra.mxu0 0
        %761 = vmatpush.bf16.msra.mxu0 0
        %762 = vmatpush.bf16.msra.mxu0 0
        %763 = vmatpush.bf16.msra.mxu0 0
        %764 = vmatpush.bf16.msra.mxu0 0
        %765 = vmatpush.bf16.msra.mxu0 %v316
        %766 = vmatmul.bf16.gmra.mxu0 %v756
        %v767 = vpop.f32.mrf.mxu0
        %v768 = vadd.f32 0.0, %v767
        %v769 = vpop.f32.mrf.mxu0
        %770 = vdwg.mxu0
        %s771 = scalar_lea.vmem %s4, 128
        %v772 = vld [vmem:[%s771] sm:$0xff]
        %v773 = vld [vmem:[%s771 + $0x8] sm:$0xff]
        %v774 = vld [vmem:[%s771 + $0x10] sm:$0xff]
        %v775 = vld [vmem:[%s771 + $0x18] sm:$0xff]
        %v776 = vld [vmem:[%s771 + $0x20] sm:$0xff]
        %v777 = vld [vmem:[%s771 + $0x28] sm:$0xff]
        %v778 = vld [vmem:[%s771 + $0x30] sm:$0xff]
        %v779 = vld [vmem:[%s771 + $0x38] sm:$0xff]
        %v781 = vrot.slane %v768, 1
        %v782 = vrot.slane %v768, 2
        %v783 = vrot.slane %v768, 3
        %v784 = vrot.slane %v768, 4
        %v785 = vrot.slane %v768, 5
        %v786 = vrot.slane %v768, 6
        %v787 = vrot.slane %v768, 7
        %789 = vset.pattern.permute.xlu0 0
        %790 = vperm.xlu0 %789, %v772
        %v791 = vpop.permute.xlu0 %790
        %794 = vset.pattern.permute.xlu0 0
        %795 = vperm.xlu0 %794, %v773
        %v796 = vpop.permute.xlu0 %795
        %799 = vset.pattern.permute.xlu0 0
        %800 = vperm.xlu0 %799, %v774
        %v801 = vpop.permute.xlu0 %800
        %804 = vset.pattern.permute.xlu0 0
        %805 = vperm.xlu0 %804, %v775
        %v806 = vpop.permute.xlu0 %805
        %809 = vset.pattern.permute.xlu0 0
        %810 = vperm.xlu0 %809, %v776
        %v811 = vpop.permute.xlu0 %810
        %814 = vset.pattern.permute.xlu0 0
        %815 = vperm.xlu0 %814, %v777
        %v816 = vpop.permute.xlu0 %815
        %819 = vset.pattern.permute.xlu0 0
        %820 = vperm.xlu0 %819, %v778
        %v821 = vpop.permute.xlu0 %820
        %824 = vset.pattern.permute.xlu0 0
        %825 = vperm.xlu0 %824, %v779
        %v826 = vpop.permute.xlu0 %825
        %v828 = vperm.slane %v768, 0
        %v829 = vperm.slane %v781, 0
        %v830 = vperm.slane %v782, 0
        %v831 = vperm.slane %v783, 0
        %v832 = vperm.slane %v784, 0
        %v833 = vperm.slane %v785, 0
        %v834 = vperm.slane %v786, 0
        %v835 = vperm.slane %v787, 0
        %v844 = vmul.f32 %v791, %v828
        %v845 = vmul.f32 %v796, %v828
        %v846 = vmul.f32 %v801, %v828
        %v847 = vmul.f32 %v806, %v828
        %v848 = vmul.f32 %v811, %v828
        %v849 = vmul.f32 %v816, %v828
        %v850 = vmul.f32 %v821, %v828
        %v851 = vmul.f32 %v826, %v828
        %v852 = vmul.f32 %v791, %v829
        %v853 = vmul.f32 %v796, %v829
        %v854 = vmul.f32 %v801, %v829
        %v855 = vmul.f32 %v806, %v829
        %v856 = vmul.f32 %v811, %v829
        %v857 = vmul.f32 %v816, %v829
        %v858 = vmul.f32 %v821, %v829
        %v859 = vmul.f32 %v826, %v829
        %v860 = vmul.f32 %v791, %v830
        %v861 = vmul.f32 %v796, %v830
        %v862 = vmul.f32 %v801, %v830
        %v863 = vmul.f32 %v806, %v830
        %v864 = vmul.f32 %v811, %v830
        %v865 = vmul.f32 %v816, %v830
        %v866 = vmul.f32 %v821, %v830
        %v867 = vmul.f32 %v826, %v830
        %v868 = vmul.f32 %v791, %v831
        %v869 = vmul.f32 %v796, %v831
        %v870 = vmul.f32 %v801, %v831
        %v871 = vmul.f32 %v806, %v831
        %v872 = vmul.f32 %v811, %v831
        %v873 = vmul.f32 %v816, %v831
        %v874 = vmul.f32 %v821, %v831
        %v875 = vmul.f32 %v826, %v831
        %v876 = vmul.f32 %v791, %v832
        %v877 = vmul.f32 %v796, %v832
        %v878 = vmul.f32 %v801, %v832
        %v879 = vmul.f32 %v806, %v832
        %v880 = vmul.f32 %v811, %v832
        %v881 = vmul.f32 %v816, %v832
        %v882 = vmul.f32 %v821, %v832
        %v883 = vmul.f32 %v826, %v832
        %v884 = vmul.f32 %v791, %v833
        %v885 = vmul.f32 %v796, %v833
        %v886 = vmul.f32 %v801, %v833
        %v887 = vmul.f32 %v806, %v833
        %v888 = vmul.f32 %v811, %v833
        %v889 = vmul.f32 %v816, %v833
        %v890 = vmul.f32 %v821, %v833
        %v891 = vmul.f32 %v826, %v833
        %v892 = vmul.f32 %v791, %v834
        %v893 = vmul.f32 %v796, %v834
        %v894 = vmul.f32 %v801, %v834
        %v895 = vmul.f32 %v806, %v834
        %v896 = vmul.f32 %v811, %v834
        %v897 = vmul.f32 %v816, %v834
        %v898 = vmul.f32 %v821, %v834
        %v899 = vmul.f32 %v826, %v834
        %v900 = vmul.f32 %v791, %v835
        %v901 = vmul.f32 %v796, %v835
        %v902 = vmul.f32 %v801, %v835
        %v903 = vmul.f32 %v806, %v835
        %v904 = vmul.f32 %v811, %v835
        %v905 = vmul.f32 %v816, %v835
        %v906 = vmul.f32 %v821, %v835
        %v907 = vmul.f32 %v826, %v835
        %v908 = vadd.f32 %v689, %v844
        %v909 = vadd.f32 %v690, %v845
        %v910 = vadd.f32 %v691, %v846
        %v911 = vadd.f32 %v692, %v847
        %v912 = vadd.f32 %v693, %v848
        %v913 = vadd.f32 %v694, %v849
        %v914 = vadd.f32 %v695, %v850
        %v915 = vadd.f32 %v696, %v851
        %v916 = vadd.f32 %v697, %v852
        %v917 = vadd.f32 %v698, %v853
        %v918 = vadd.f32 %v699, %v854
        %v919 = vadd.f32 %v700, %v855
        %v920 = vadd.f32 %v701, %v856
        %v921 = vadd.f32 %v702, %v857
        %v922 = vadd.f32 %v703, %v858
        %v923 = vadd.f32 %v704, %v859
        %v924 = vadd.f32 %v705, %v860
        %v925 = vadd.f32 %v706, %v861
        %v926 = vadd.f32 %v707, %v862
        %v927 = vadd.f32 %v708, %v863
        %v928 = vadd.f32 %v709, %v864
        %v929 = vadd.f32 %v710, %v865
        %v930 = vadd.f32 %v711, %v866
        %v931 = vadd.f32 %v712, %v867
        %v932 = vadd.f32 %v713, %v868
        %v933 = vadd.f32 %v714, %v869
        %v934 = vadd.f32 %v715, %v870
        %v935 = vadd.f32 %v716, %v871
        %v936 = vadd.f32 %v717, %v872
        %v937 = vadd.f32 %v718, %v873
        %v938 = vadd.f32 %v719, %v874
        %v939 = vadd.f32 %v720, %v875
        %v940 = vadd.f32 %v721, %v876
        %v941 = vadd.f32 %v722, %v877
        %v942 = vadd.f32 %v723, %v878
        %v943 = vadd.f32 %v724, %v879
        %v944 = vadd.f32 %v725, %v880
        %v945 = vadd.f32 %v726, %v881
        %v946 = vadd.f32 %v727, %v882
        %v947 = vadd.f32 %v728, %v883
        %v948 = vadd.f32 %v729, %v884
        %v949 = vadd.f32 %v730, %v885
        %v950 = vadd.f32 %v731, %v886
        %v951 = vadd.f32 %v732, %v887
        %v952 = vadd.f32 %v733, %v888
        %v953 = vadd.f32 %v734, %v889
        %v954 = vadd.f32 %v735, %v890
        %v955 = vadd.f32 %v736, %v891
        %v956 = vadd.f32 %v737, %v892
        %v957 = vadd.f32 %v738, %v893
        %v958 = vadd.f32 %v739, %v894
        %v959 = vadd.f32 %v740, %v895
        %v960 = vadd.f32 %v741, %v896
        %v961 = vadd.f32 %v742, %v897
        %v962 = vadd.f32 %v743, %v898
        %v963 = vadd.f32 %v744, %v899
        %v964 = vadd.f32 %v745, %v900
        %v965 = vadd.f32 %v746, %v901
        %v966 = vadd.f32 %v747, %v902
        %v967 = vadd.f32 %v748, %v903
        %v968 = vadd.f32 %v749, %v904
        %v969 = vadd.f32 %v750, %v905
        %v970 = vadd.f32 %v751, %v906
        %v971 = vadd.f32 %v752, %v907
        %972 = vrot.lane.b32.xlu0 %v533, 116
        %v973 = vpop.permute.xlu0 %972
        %v975 = vsel %vm310, %v973, 0
        %977 = vmatpush.bf16.msra.mxu0 0
        %978 = vmatpush.bf16.msra.mxu0 0
        %979 = vmatpush.bf16.msra.mxu0 0
        %980 = vmatpush.bf16.msra.mxu0 0
        %981 = vmatpush.bf16.msra.mxu0 0
        %982 = vmatpush.bf16.msra.mxu0 0
        %983 = vmatpush.bf16.msra.mxu0 0
        %984 = vmatpush.bf16.msra.mxu0 %v316
        %985 = vmatmul.bf16.gmra.mxu0 %v975
        %v986 = vpop.f32.mrf.mxu0
        %v987 = vadd.f32 0.0, %v986
        %v988 = vpop.f32.mrf.mxu0
        %989 = vdwg.mxu0
        %s990 = scalar_lea.vmem %s4, 192
        %v991 = vld [vmem:[%s990] sm:$0xff]
        %v992 = vld [vmem:[%s990 + $0x8] sm:$0xff]
        %v993 = vld [vmem:[%s990 + $0x10] sm:$0xff]
        %v994 = vld [vmem:[%s990 + $0x18] sm:$0xff]
        %v995 = vld [vmem:[%s990 + $0x20] sm:$0xff]
        %v996 = vld [vmem:[%s990 + $0x28] sm:$0xff]
        %v997 = vld [vmem:[%s990 + $0x30] sm:$0xff]
        %v998 = vld [vmem:[%s990 + $0x38] sm:$0xff]
        %v1000 = vrot.slane %v987, 1
        %v1001 = vrot.slane %v987, 2
        %v1002 = vrot.slane %v987, 3
        %v1003 = vrot.slane %v987, 4
        %v1004 = vrot.slane %v987, 5
        %v1005 = vrot.slane %v987, 6
        %v1006 = vrot.slane %v987, 7
        %1008 = vset.pattern.permute.xlu0 0
        %1009 = vperm.xlu0 %1008, %v991
        %v1010 = vpop.permute.xlu0 %1009
        %1013 = vset.pattern.permute.xlu0 0
        %1014 = vperm.xlu0 %1013, %v992
        %v1015 = vpop.permute.xlu0 %1014
        %1018 = vset.pattern.permute.xlu0 0
        %1019 = vperm.xlu0 %1018, %v993
        %v1020 = vpop.permute.xlu0 %1019
        %1023 = vset.pattern.permute.xlu0 0
        %1024 = vperm.xlu0 %1023, %v994
        %v1025 = vpop.permute.xlu0 %1024
        %1028 = vset.pattern.permute.xlu0 0
        %1029 = vperm.xlu0 %1028, %v995
        %v1030 = vpop.permute.xlu0 %1029
        %1033 = vset.pattern.permute.xlu0 0
        %1034 = vperm.xlu0 %1033, %v996
        %v1035 = vpop.permute.xlu0 %1034
        %1038 = vset.pattern.permute.xlu0 0
        %1039 = vperm.xlu0 %1038, %v997
        %v1040 = vpop.permute.xlu0 %1039
        %1043 = vset.pattern.permute.xlu0 0
        %1044 = vperm.xlu0 %1043, %v998
        %v1045 = vpop.permute.xlu0 %1044
        %v1047 = vperm.slane %v987, 0
        %v1048 = vperm.slane %v1000, 0
        %v1049 = vperm.slane %v1001, 0
        %v1050 = vperm.slane %v1002, 0
        %v1051 = vperm.slane %v1003, 0
        %v1052 = vperm.slane %v1004, 0
        %v1053 = vperm.slane %v1005, 0
        %v1054 = vperm.slane %v1006, 0
        %v1063 = vmul.f32 %v1010, %v1047
        %v1064 = vmul.f32 %v1015, %v1047
        %v1065 = vmul.f32 %v1020, %v1047
        %v1066 = vmul.f32 %v1025, %v1047
        %v1067 = vmul.f32 %v1030, %v1047
        %v1068 = vmul.f32 %v1035, %v1047
        %v1069 = vmul.f32 %v1040, %v1047
        %v1070 = vmul.f32 %v1045, %v1047
        %v1071 = vmul.f32 %v1010, %v1048
        %v1072 = vmul.f32 %v1015, %v1048
        %v1073 = vmul.f32 %v1020, %v1048
        %v1074 = vmul.f32 %v1025, %v1048
        %v1075 = vmul.f32 %v1030, %v1048
        %v1076 = vmul.f32 %v1035, %v1048
        %v1077 = vmul.f32 %v1040, %v1048
        %v1078 = vmul.f32 %v1045, %v1048
        %v1079 = vmul.f32 %v1010, %v1049
        %v1080 = vmul.f32 %v1015, %v1049
        %v1081 = vmul.f32 %v1020, %v1049
        %v1082 = vmul.f32 %v1025, %v1049
        %v1083 = vmul.f32 %v1030, %v1049
        %v1084 = vmul.f32 %v1035, %v1049
        %v1085 = vmul.f32 %v1040, %v1049
        %v1086 = vmul.f32 %v1045, %v1049
        %v1087 = vmul.f32 %v1010, %v1050
        %v1088 = vmul.f32 %v1015, %v1050
        %v1089 = vmul.f32 %v1020, %v1050
        %v1090 = vmul.f32 %v1025, %v1050
        %v1091 = vmul.f32 %v1030, %v1050
        %v1092 = vmul.f32 %v1035, %v1050
        %v1093 = vmul.f32 %v1040, %v1050
        %v1094 = vmul.f32 %v1045, %v1050
        %v1095 = vmul.f32 %v1010, %v1051
        %v1096 = vmul.f32 %v1015, %v1051
        %v1097 = vmul.f32 %v1020, %v1051
        %v1098 = vmul.f32 %v1025, %v1051
        %v1099 = vmul.f32 %v1030, %v1051
        %v1100 = vmul.f32 %v1035, %v1051
        %v1101 = vmul.f32 %v1040, %v1051
        %v1102 = vmul.f32 %v1045, %v1051
        %v1103 = vmul.f32 %v1010, %v1052
        %v1104 = vmul.f32 %v1015, %v1052
        %v1105 = vmul.f32 %v1020, %v1052
        %v1106 = vmul.f32 %v1025, %v1052
        %v1107 = vmul.f32 %v1030, %v1052
        %v1108 = vmul.f32 %v1035, %v1052
        %v1109 = vmul.f32 %v1040, %v1052
        %v1110 = vmul.f32 %v1045, %v1052
        %v1111 = vmul.f32 %v1010, %v1053
        %v1112 = vmul.f32 %v1015, %v1053
        %v1113 = vmul.f32 %v1020, %v1053
        %v1114 = vmul.f32 %v1025, %v1053
        %v1115 = vmul.f32 %v1030, %v1053
        %v1116 = vmul.f32 %v1035, %v1053
        %v1117 = vmul.f32 %v1040, %v1053
        %v1118 = vmul.f32 %v1045, %v1053
        %v1119 = vmul.f32 %v1010, %v1054
        %v1120 = vmul.f32 %v1015, %v1054
        %v1121 = vmul.f32 %v1020, %v1054
        %v1122 = vmul.f32 %v1025, %v1054
        %v1123 = vmul.f32 %v1030, %v1054
        %v1124 = vmul.f32 %v1035, %v1054
        %v1125 = vmul.f32 %v1040, %v1054
        %v1126 = vmul.f32 %v1045, %v1054
        %v1127 = vadd.f32 %v908, %v1063
        %v1128 = vadd.f32 %v909, %v1064
        %v1129 = vadd.f32 %v910, %v1065
        %v1130 = vadd.f32 %v911, %v1066
        %v1131 = vadd.f32 %v912, %v1067
        %v1132 = vadd.f32 %v913, %v1068
        %v1133 = vadd.f32 %v914, %v1069
        %v1134 = vadd.f32 %v915, %v1070
        %v1135 = vadd.f32 %v916, %v1071
        %v1136 = vadd.f32 %v917, %v1072
        %v1137 = vadd.f32 %v918, %v1073
        %v1138 = vadd.f32 %v919, %v1074
        %v1139 = vadd.f32 %v920, %v1075
        %v1140 = vadd.f32 %v921, %v1076
        %v1141 = vadd.f32 %v922, %v1077
        %v1142 = vadd.f32 %v923, %v1078
        %v1143 = vadd.f32 %v924, %v1079
        %v1144 = vadd.f32 %v925, %v1080
        %v1145 = vadd.f32 %v926, %v1081
        %v1146 = vadd.f32 %v927, %v1082
        %v1147 = vadd.f32 %v928, %v1083
        %v1148 = vadd.f32 %v929, %v1084
        %v1149 = vadd.f32 %v930, %v1085
        %v1150 = vadd.f32 %v931, %v1086
        %v1151 = vadd.f32 %v932, %v1087
        %v1152 = vadd.f32 %v933, %v1088
        %v1153 = vadd.f32 %v934, %v1089
        %v1154 = vadd.f32 %v935, %v1090
        %v1155 = vadd.f32 %v936, %v1091
        %v1156 = vadd.f32 %v937, %v1092
        %v1157 = vadd.f32 %v938, %v1093
        %v1158 = vadd.f32 %v939, %v1094
        %v1159 = vadd.f32 %v940, %v1095
        %v1160 = vadd.f32 %v941, %v1096
        %v1161 = vadd.f32 %v942, %v1097
        %v1162 = vadd.f32 %v943, %v1098
        %v1163 = vadd.f32 %v944, %v1099
        %v1164 = vadd.f32 %v945, %v1100
        %v1165 = vadd.f32 %v946, %v1101
        %v1166 = vadd.f32 %v947, %v1102
        %v1167 = vadd.f32 %v948, %v1103
        %v1168 = vadd.f32 %v949, %v1104
        %v1169 = vadd.f32 %v950, %v1105
        %v1170 = vadd.f32 %v951, %v1106
        %v1171 = vadd.f32 %v952, %v1107
        %v1172 = vadd.f32 %v953, %v1108
        %v1173 = vadd.f32 %v954, %v1109
        %v1174 = vadd.f32 %v955, %v1110
        %v1175 = vadd.f32 %v956, %v1111
        %v1176 = vadd.f32 %v957, %v1112
        %v1177 = vadd.f32 %v958, %v1113
        %v1178 = vadd.f32 %v959, %v1114
        %v1179 = vadd.f32 %v960, %v1115
        %v1180 = vadd.f32 %v961, %v1116
        %v1181 = vadd.f32 %v962, %v1117
        %v1182 = vadd.f32 %v963, %v1118
        %v1183 = vadd.f32 %v964, %v1119
        %v1184 = vadd.f32 %v965, %v1120
        %v1185 = vadd.f32 %v966, %v1121
        %v1186 = vadd.f32 %v967, %v1122
        %v1187 = vadd.f32 %v968, %v1123
        %v1188 = vadd.f32 %v969, %v1124
        %v1189 = vadd.f32 %v970, %v1125
        %v1190 = vadd.f32 %v971, %v1126
        %v1191 = vpack.c.bf16 %v1127, %v1127
        %v1192 = vpack.c.bf16 %v1128, %v1128
        %v1193 = vpack.c.bf16 %v1129, %v1129
        %v1194 = vpack.c.bf16 %v1130, %v1130
        %v1195 = vpack.c.bf16 %v1131, %v1131
        %v1196 = vpack.c.bf16 %v1132, %v1132
        %v1197 = vpack.c.bf16 %v1133, %v1133
        %v1198 = vpack.c.bf16 %v1134, %v1134
        %v1199 = vpack.c.bf16 %v1135, %v1135
        %v1200 = vpack.c.bf16 %v1136, %v1136
        %v1201 = vpack.c.bf16 %v1137, %v1137
        %v1202 = vpack.c.bf16 %v1138, %v1138
        %v1203 = vpack.c.bf16 %v1139, %v1139
        %v1204 = vpack.c.bf16 %v1140, %v1140
        %v1205 = vpack.c.bf16 %v1141, %v1141
        %v1206 = vpack.c.bf16 %v1142, %v1142
        %v1207 = vpack.c.bf16 %v1143, %v1143
        %v1208 = vpack.c.bf16 %v1144, %v1144
        %v1209 = vpack.c.bf16 %v1145, %v1145
        %v1210 = vpack.c.bf16 %v1146, %v1146
        %v1211 = vpack.c.bf16 %v1147, %v1147
        %v1212 = vpack.c.bf16 %v1148, %v1148
        %v1213 = vpack.c.bf16 %v1149, %v1149
        %v1214 = vpack.c.bf16 %v1150, %v1150
        %v1215 = vpack.c.bf16 %v1151, %v1151
        %v1216 = vpack.c.bf16 %v1152, %v1152
        %v1217 = vpack.c.bf16 %v1153, %v1153
        %v1218 = vpack.c.bf16 %v1154, %v1154
        %v1219 = vpack.c.bf16 %v1155, %v1155
        %v1220 = vpack.c.bf16 %v1156, %v1156
        %v1221 = vpack.c.bf16 %v1157, %v1157
        %v1222 = vpack.c.bf16 %v1158, %v1158
        %v1223 = vpack.c.bf16 %v1159, %v1159
        %v1224 = vpack.c.bf16 %v1160, %v1160
        %v1225 = vpack.c.bf16 %v1161, %v1161
        %v1226 = vpack.c.bf16 %v1162, %v1162
        %v1227 = vpack.c.bf16 %v1163, %v1163
        %v1228 = vpack.c.bf16 %v1164, %v1164
        %v1229 = vpack.c.bf16 %v1165, %v1165
        %v1230 = vpack.c.bf16 %v1166, %v1166
        %v1231 = vpack.c.bf16 %v1167, %v1167
        %v1232 = vpack.c.bf16 %v1168, %v1168
        %v1233 = vpack.c.bf16 %v1169, %v1169
        %v1234 = vpack.c.bf16 %v1170, %v1170
        %v1235 = vpack.c.bf16 %v1171, %v1171
        %v1236 = vpack.c.bf16 %v1172, %v1172
        %v1237 = vpack.c.bf16 %v1173, %v1173
        %v1238 = vpack.c.bf16 %v1174, %v1174
        %v1239 = vpack.c.bf16 %v1175, %v1175
        %v1240 = vpack.c.bf16 %v1176, %v1176
        %v1241 = vpack.c.bf16 %v1177, %v1177
        %v1242 = vpack.c.bf16 %v1178, %v1178
        %v1243 = vpack.c.bf16 %v1179, %v1179
        %v1244 = vpack.c.bf16 %v1180, %v1180
        %v1245 = vpack.c.bf16 %v1181, %v1181
        %v1246 = vpack.c.bf16 %v1182, %v1182
        %v1247 = vpack.c.bf16 %v1183, %v1183
        %v1248 = vpack.c.bf16 %v1184, %v1184
        %v1249 = vpack.c.bf16 %v1185, %v1185
        %v1250 = vpack.c.bf16 %v1186, %v1186
        %v1251 = vpack.c.bf16 %v1187, %v1187
        %v1252 = vpack.c.bf16 %v1188, %v1188
        %v1253 = vpack.c.bf16 %v1189, %v1189
        %v1254 = vpack.c.bf16 %v1190, %v1190
        %vm1255 = vcmask 519168
        %1256 = vst.msk [vmem:[%s217] sm:$0xf] %vm1255, %v1191
        %1257 = vst.msk [vmem:[%s217 + $0x4] sm:$0xf] %vm1255, %v1192
        %1258 = vst.msk [vmem:[%s217 + $0x8] sm:$0xf] %vm1255, %v1193
        %1259 = vst.msk [vmem:[%s217 + $0xc] sm:$0xf] %vm1255, %v1194
        %1260 = vst.msk [vmem:[%s217 + $0x10] sm:$0xf] %vm1255, %v1195
        %1261 = vst.msk [vmem:[%s217 + $0x14] sm:$0xf] %vm1255, %v1196
        %1262 = vst.msk [vmem:[%s217 + $0x18] sm:$0xf] %vm1255, %v1197
        %1263 = vst.msk [vmem:[%s217 + $0x1c] sm:$0xf] %vm1255, %v1198
        %1264 = vst.msk [vmem:[%s217 + $0x20] sm:$0xf] %vm1255, %v1199
        %1265 = vst.msk [vmem:[%s217 + $0x24] sm:$0xf] %vm1255, %v1200
        %1266 = vst.msk [vmem:[%s217 + $0x28] sm:$0xf] %vm1255, %v1201
        %1267 = vst.msk [vmem:[%s217 + $0x2c] sm:$0xf] %vm1255, %v1202
        %1268 = vst.msk [vmem:[%s217 + $0x30] sm:$0xf] %vm1255, %v1203
        %1269 = vst.msk [vmem:[%s217 + $0x34] sm:$0xf] %vm1255, %v1204
        %1270 = vst.msk [vmem:[%s217 + $0x38] sm:$0xf] %vm1255, %v1205
        %1271 = vst.msk [vmem:[%s217 + $0x3c] sm:$0xf] %vm1255, %v1206
        %1272 = vst.msk [vmem:[%s217 + $0x40] sm:$0xf] %vm1255, %v1207
        %1273 = vst.msk [vmem:[%s217 + $0x44] sm:$0xf] %vm1255, %v1208
        %1274 = vst.msk [vmem:[%s217 + $0x48] sm:$0xf] %vm1255, %v1209
        %1275 = vst.msk [vmem:[%s217 + $0x4c] sm:$0xf] %vm1255, %v1210
        %1276 = vst.msk [vmem:[%s217 + $0x50] sm:$0xf] %vm1255, %v1211
        %1277 = vst.msk [vmem:[%s217 + $0x54] sm:$0xf] %vm1255, %v1212
        %1278 = vst.msk [vmem:[%s217 + $0x58] sm:$0xf] %vm1255, %v1213
        %1279 = vst.msk [vmem:[%s217 + $0x5c] sm:$0xf] %vm1255, %v1214
        %1280 = vst.msk [vmem:[%s217 + $0x60] sm:$0xf] %vm1255, %v1215
        %1281 = vst.msk [vmem:[%s217 + $0x64] sm:$0xf] %vm1255, %v1216
        %1282 = vst.msk [vmem:[%s217 + $0x68] sm:$0xf] %vm1255, %v1217
        %1283 = vst.msk [vmem:[%s217 + $0x6c] sm:$0xf] %vm1255, %v1218
        %1284 = vst.msk [vmem:[%s217 + $0x70] sm:$0xf] %vm1255, %v1219
        %1285 = vst.msk [vmem:[%s217 + $0x74] sm:$0xf] %vm1255, %v1220
        %1286 = vst.msk [vmem:[%s217 + $0x78] sm:$0xf] %vm1255, %v1221
        %1287 = vst.msk [vmem:[%s217 + $0x7c] sm:$0xf] %vm1255, %v1222
        %1288 = vst.msk [vmem:[%s217 + $0x80] sm:$0xf] %vm1255, %v1223
        %1289 = vst.msk [vmem:[%s217 + $0x84] sm:$0xf] %vm1255, %v1224
        %1290 = vst.msk [vmem:[%s217 + $0x88] sm:$0xf] %vm1255, %v1225
        %1291 = vst.msk [vmem:[%s217 + $0x8c] sm:$0xf] %vm1255, %v1226
        %1292 = vst.msk [vmem:[%s217 + $0x90] sm:$0xf] %vm1255, %v1227
        %1293 = vst.msk [vmem:[%s217 + $0x94] sm:$0xf] %vm1255, %v1228
        %1294 = vst.msk [vmem:[%s217 + $0x98] sm:$0xf] %vm1255, %v1229
        %1295 = vst.msk [vmem:[%s217 + $0x9c] sm:$0xf] %vm1255, %v1230
        %1296 = vst.msk [vmem:[%s217 + $0xa0] sm:$0xf] %vm1255, %v1231
        %1297 = vst.msk [vmem:[%s217 + $0xa4] sm:$0xf] %vm1255, %v1232
        %1298 = vst.msk [vmem:[%s217 + $0xa8] sm:$0xf] %vm1255, %v1233
        %1299 = vst.msk [vmem:[%s217 + $0xac] sm:$0xf] %vm1255, %v1234
        %1300 = vst.msk [vmem:[%s217 + $0xb0] sm:$0xf] %vm1255, %v1235
        %1301 = vst.msk [vmem:[%s217 + $0xb4] sm:$0xf] %vm1255, %v1236
        %1302 = vst.msk [vmem:[%s217 + $0xb8] sm:$0xf] %vm1255, %v1237
        %1303 = vst.msk [vmem:[%s217 + $0xbc] sm:$0xf] %vm1255, %v1238
        %1304 = vst.msk [vmem:[%s217 + $0xc0] sm:$0xf] %vm1255, %v1239
        %1305 = vst.msk [vmem:[%s217 + $0xc4] sm:$0xf] %vm1255, %v1240
        %1306 = vst.msk [vmem:[%s217 + $0xc8] sm:$0xf] %vm1255, %v1241
        %1307 = vst.msk [vmem:[%s217 + $0xcc] sm:$0xf] %vm1255, %v1242
        %1308 = vst.msk [vmem:[%s217 + $0xd0] sm:$0xf] %vm1255, %v1243
        %1309 = vst.msk [vmem:[%s217 + $0xd4] sm:$0xf] %vm1255, %v1244
        %1310 = vst.msk [vmem:[%s217 + $0xd8] sm:$0xf] %vm1255, %v1245
        %1311 = vst.msk [vmem:[%s217 + $0xdc] sm:$0xf] %vm1255, %v1246
        %1312 = vst.msk [vmem:[%s217 + $0xe0] sm:$0xf] %vm1255, %v1247
        %1313 = vst.msk [vmem:[%s217 + $0xe4] sm:$0xf] %vm1255, %v1248
        %1314 = vst.msk [vmem:[%s217 + $0xe8] sm:$0xf] %vm1255, %v1249
        %1315 = vst.msk [vmem:[%s217 + $0xec] sm:$0xf] %vm1255, %v1250
        %1316 = vst.msk [vmem:[%s217 + $0xf0] sm:$0xf] %vm1255, %v1251
        %1317 = vst.msk [vmem:[%s217 + $0xf4] sm:$0xf] %vm1255, %v1252
        %1318 = vst.msk [vmem:[%s217 + $0xf8] sm:$0xf] %vm1255, %v1253
        %1319 = vst.msk [vmem:[%s217 + $0xfc] sm:$0xf] %vm1255, %v1254
        %s1320 = sand.u32 %s137, 1
        %s1321 = scalar_lea.sflag [#allocation3], %s1320
        %s1322 = sand.u32 %s137, 1
        %s1323 = smul.addr %s1322, 256
        %s1324 = scalar_lea.vmem [#allocation2], %s1323
        // Predicated region
        $region41: #{tpu_custom_call.1} parent=39 // pred_check
          %p1325 = pneg %p147
        $region42: #{tpu_custom_call.1} parent=39 // pred_check_branch
          %1327 = sbr.rel (%p1325) target = $region44
        $region43: #{tpu_custom_call.1} parent=39 // pred_region
          %1329 = vsyncadd %s1321, 0
          %s1330 = smul.addr %s19, 64
          %s1331 = smul.addr %s1330, 4
          %s1332 = scalar_lea.hbm %s5, %s1331
          %s1333 = sshll.u32 %s1324, 4
          %s1334 = int_to_ptr.vmem [resolvable:$true] %s1333
          %s1335 = sshll.u32 %s1332, 4
          %s1336 = int_to_ptr.hbm [resolvable:$true] %s1335
          %1341 = dma.vmem_to_hbm [thread:$0]  %s1334, 4096, %s1336, %s1321, 64, 64, 4
        $region44: #{tpu_custom_call.1} parent=39 // pred_fallthru
          _
      $region40: #{tpu_custom_call.1} parent=5 // pred_fallthru
        _
      %p1342 = scmp.le.s32.totalorder 2, %s14
      // Predicated region
      $region45: #{tpu_custom_call.1} parent=5 // pred_check
        %p1343 = pneg %p1342
      $region46: #{tpu_custom_call.1} parent=5 // pred_check_branch
        %1345 = sbr.rel (%p1343) target = $region48
      $region47: #{tpu_custom_call.1} parent=5 // pred_region
        %s1346 = ssub.s32 %s14, 2
        // Predicated region
        $region49: #{tpu_custom_call.1} parent=47 // pred_check
          %p1347 = pneg %p153
        $region50: #{tpu_custom_call.1} parent=47 // pred_check_branch
          %1349 = sbr.rel (%p1347) target = $region52
        $region51: #{tpu_custom_call.1} parent=47 // pred_region
          %s1350 = sand.u32 %s138, 1
          %s1351 = scalar_lea.sflag [#allocation3], %s1350
          %s1352 = sand.u32 %s138, 1
          %s1353 = smul.addr %s1352, 256
          %s1354 = scalar_lea.vmem [#allocation2], %s1353
          %1356 = dma.done %s1351, 4096
        $region52: #{tpu_custom_call.1} parent=47 // pred_fallthru
          _
      $region48: #{tpu_custom_call.1} parent=5 // pred_fallthru
        _
    $region6: #{tpu_custom_call.1} parent=1 // loop_footer
      %s18 = sadd.s32 1, %s14
    $region7: #{tpu_custom_call.1} parent=1 // loop_footer_branch
      %13 = sbr.rel target = $region3
    $region8: #{tpu_custom_call.1} parent=1 // loop_exit
      _
    %1357 = vsyncpa [#allocation3], 1
    %s1358 = scalar_lea.sflag [#allocation3], 1
    %1359 = vsyncpa %s1358, 1

</llo_original>
